<compile_context>
chip_gen: v6e
topology: v6e:2x2x1
jax: 0.10.0
libtpu: 0.0.40
codegen_flags: <defaults>
</compile_context>

<pallas_src>
import math

import jax
import jax.numpy as jnp
from jax.experimental import pallas as pl
from jax.experimental.pallas import tpu as pltpu

EPSILON = 1e-06
HIDDEN_DIM = 8            # hidden_dim of the SigmoidFlow layer
NO_LOGIT = False          # matches SigmoidFlow(hidden_dim, no_logit=False)
_LOG1M_EPS = math.log(1.0 - EPSILON)
_TINY = 1e-35             # floor for the logj sum (guards log(0) at extreme saturation)

# Token tile (lane axis). Blocks are small (params block = tile_n*24*4 B); vreg
# pressure, not VMEM, is the practical limit — spills hide under the EUP bottleneck.
MAX_TILE_N = 2048


def _round_up(x, m):
    return ((x + m - 1) // m) * m


def _log_sigmoid(z):
    # log(sigmoid(z)) = -softplus(-z), minus EPSILON as in the reference code
    return -jax.nn.softplus(-z) - EPSILON


def sigmoid_flow_kernel(p_ref, x_ref, xnew_ref, ldc_ref):
    H = HIDDEN_DIM
    P = 3 * H

    p_tok = p_ref[0]                                   # [T, 3H] token-major, straight from HBM
    x = x_ref[0]                                       # [1, T]

    # Relayout [T, 3H] -> [3H, T] via identity matmul on the idle MXU (NT contraction,
    # the same dot_general pattern as flash-attention scores). Tokens land on lanes,
    # H on sublanes, so every H-reduction below is a cheap 8-row sublane reduction.
    rows = jax.lax.broadcasted_iota(jnp.int32, (P, P), 0)
    cols = jax.lax.broadcasted_iota(jnp.int32, (P, P), 1)
    eye = (rows == cols).astype(jnp.float32)
    p = jax.lax.dot_general(eye, p_tok, (((1,), (1,)), ((), ())),
                            preferred_element_type=jnp.float32)    # [3H, T]

    pa = p[0:H, :]                                     # pre-softplus "a"   [H, T]
    pb = p[H:2 * H, :]                                 # "b"                [H, T]
    pc = p[2 * H:3 * H, :]                             # pre-softmax "w"    [H, T]

    x_cl = jnp.clip(x, -100.0, 100.0)

    # a = softplus(params[..., :H]) + eps
    a = jax.nn.softplus(pa) + EPSILON                  # [H, T]

    # softmax over H (sublane axis); exp/sum shared between x_pre and logj
    c_max = jnp.max(pc, axis=0, keepdims=True)         # [1, T]
    c_shift = pc - c_max
    c_exp = jnp.exp(c_shift)                           # [H, T]
    c_sum = jnp.sum(c_exp, axis=0, keepdims=True)      # [1, T]
    log_csum = jnp.log(c_sum)
    inv_csum = pl.reciprocal(c_sum, approx=False)      # exact: 1e-4 tolerances

    # pre_sigm = a * clamp(x) + b ; one shared softplus(-z) feeds sigmoid and logj
    pre_sigm = a * x_cl + pb                           # [H, T]
    sp_neg = jax.nn.softplus(-pre_sigm)                # [H, T]
    sigm = jnp.clip(jnp.exp(-sp_neg), EPSILON, 1.0 - EPSILON)
    x_pre = jnp.sum(c_exp * sigm, axis=0, keepdims=True) * inv_csum   # [1, T]

    # logj = logsumexp_h(log_softmax(c) + log_sigmoid(z) + log_sigmoid(-z) + log(a))
    #      = log( sum_h c_exp_h * a_h * exp(-(z_h + 2*softplus(-z_h))) ) - log(c_sum) - 2*eps
    # (direct weighted sum: no log(a), no log_softmax, no per-hidden max pass)
    jterm = (c_exp * a) * jnp.exp(-(pre_sigm + 2.0 * sp_neg))          # [H, T]
    jsum = jnp.maximum(jnp.sum(jterm, axis=0, keepdims=True), _TINY)
    logj = jnp.log(jsum) - log_csum - 2.0 * EPSILON                    # [1, T]

    if NO_LOGIT:
        xnew = x_pre
        ld_contrib = logj
    else:
        # logit transform of x_pre, sharing the two logs with the logdet term
        x_pc = x_pre * (1.0 - EPSILON) + EPSILON * 0.5
        log_xpc = jnp.log(x_pc)
        log_1m_xpc = jnp.log1p(-x_pc)
        xnew = log_xpc - log_1m_xpc                                    # [1, T]
        # per-token logdet contribution (both accumulations of the reference):
        ld_contrib = 2.0 * logj + _LOG1M_EPS - log_xpc - log_1m_xpc    # [1, T]

    # per-element NaN scrub on xnew (tiling-safe; matches torch.nan_to_num on NaNs)
    xnew = jnp.where(jnp.isnan(xnew), 0.0, xnew)

    xnew_ref[0] = xnew.astype(xnew_ref.dtype)
    ldc_ref[0] = ld_contrib.astype(ldc_ref.dtype)


def sigmoid_flow_forward(params, x, logdet, hidden_dim=HIDDEN_DIM):
    """params: [B, N, 3*H], x: [B, N], logdet: [B] -> (xnew [B, N], logdet [B])"""
    B, N, P = params.shape
    H = hidden_dim
    assert P == 3 * H
    assert H == HIDDEN_DIM

    if params.dtype != jnp.float32:
        params = params.astype(jnp.float32)
    if x.dtype != jnp.float32:
        x = x.astype(jnp.float32)

    # Pad tokens only to the 128-lane granule (zero extra HBM passes when N % 128 == 0).
    n_pad = _round_up(N, 128)
    if n_pad != N:
        params = jnp.pad(params, ((0, 0), (0, n_pad - N), (0, 0)))
        x = jnp.pad(x, ((0, 0), (0, n_pad - N)))
    x3 = x.reshape(B, 1, n_pad)                        # free reshape (adds singleton dim)

    tile_n = min(MAX_TILE_N, n_pad)
    grid_t = pl.cdiv(n_pad, tile_n)
    # v7x megacore: make sure both TensorCores get work when B == 1.
    if B * grid_t < 2 and n_pad >= 256:
        tile_n = _round_up(n_pad // 2, 128)
        grid_t = pl.cdiv(n_pad, tile_n)

    grid = (B, grid_t)

    grid_spec = pltpu.PrefetchScalarGridSpec(
        num_scalar_prefetch=0,
        grid=grid,
        in_specs=[
            # params consumed token-major; last dim = 3H = full dim (no transpose pass)
            pl.BlockSpec((1, tile_n, P), lambda b, t: (b, t, 0)),
            pl.BlockSpec((1, 1, tile_n), lambda b, t: (b, 0, t)),
        ],
        out_specs=[
            pl.BlockSpec((1, 1, tile_n), lambda b, t: (b, 0, t)),
            pl.BlockSpec((1, 1, tile_n), lambda b, t: (b, 0, t)),
        ],
    )

    xnew_p, ldc_p = pl.pallas_call(
        sigmoid_flow_kernel,
        out_shape=(jax.ShapeDtypeStruct((B, 1, n_pad), jnp.float32),
                   jax.ShapeDtypeStruct((B, 1, n_pad), jnp.float32)),
        grid_spec=grid_spec,
        compiler_params=pltpu.CompilerParams(
            dimension_semantics=("parallel", "parallel")),
    )(params, x3)

    if n_pad != N:
        xnew = xnew_p[:, 0, :N]                        # only sliced when padding was applied
        ld_contrib = ldc_p[:, 0, :N]
    else:
        xnew = xnew_p[:, 0, :]                         # free reshape
        ld_contrib = ldc_p[:, 0, :]

    # tiny per-batch reduction of per-token contributions (keeps grid fully parallel)
    logdet_out = logdet.astype(jnp.float32) + jnp.sum(ld_contrib, axis=-1)
    # scrub NaNs in the final summed logdet (reference zeroes NaN logdet entries)
    logdet_out = jnp.where(jnp.isnan(logdet_out), 0.0, logdet_out)
    return xnew, logdet_out


def sigmoid_flow_ref(params, x, logdet, H):
    """Pure-JAX reference mirroring the PyTorch forward (no-NaN path)."""
    a = jax.nn.softplus(params[..., :H]) + EPSILON
    b = params[..., H:2 * H]
    w = jax.nn.softmax(params[..., 2 * H:], axis=-1)
    x_cl = jnp.clip(x, -100.0, 100.0)
    pre_sigm = a * x_cl[..., None] + b
    sigm = jnp.clip(jax.nn.sigmoid(pre_sigm), EPSILON, 1.0 - EPSILON)
    x_pre = jnp.sum(w * sigm, axis=-1)
    logj_ph = (jax.nn.log_softmax(params[..., 2 * H:], axis=-1)
               + _log_sigmoid(pre_sigm) + _log_sigmoid(-pre_sigm) + jnp.log(a))
    logj = jax.scipy.special.logsumexp(logj_ph, axis=-1)
    logdet = logdet + jnp.sum(logj, axis=tuple(range(1, logj.ndim)))
    x_pc = x_pre * (1.0 - EPSILON) + EPSILON * 0.5
    xnew = jnp.log(x_pc) - jnp.log(1.0 - x_pc)
    logdet_ = logj + math.log(1.0 - EPSILON) - (jnp.log(x_pc) + jnp.log(1.0 - x_pc))
    logdet = jnp.sum(logdet_, axis=tuple(range(1, logdet_.ndim))) + logdet
    return xnew, logdet


if __name__ == "__main__":
    B, N, H = 2, 16, HIDDEN_DIM

    key = jax.random.PRNGKey(0)
    k1, k2 = jax.random.split(key)
    params = jax.random.normal(k1, (B, N, 3 * H), dtype=jnp.float32)
    x = jax.random.normal(k2, (B, N), dtype=jnp.float32)
    logdet0 = jnp.zeros((B,), dtype=jnp.float32)

    fwd = jax.jit(sigmoid_flow_forward, static_argnames=("hidden_dim",))
    xnew, logdet = fwd(params, x, logdet0, hidden_dim=H)
    xnew = jax.block_until_ready(xnew)
    logdet = jax.block_until_ready(logdet)

    xnew_r, logdet_r = sigmoid_flow_ref(params, x, logdet0, H)
    assert jnp.allclose(xnew, xnew_r, rtol=1e-4, atol=1e-5), "xnew mismatch"
    assert jnp.allclose(logdet, logdet_r, rtol=1e-4, atol=1e-4), "logdet mismatch"

    print("KERNEL_OK")
</pallas_src>

<mosaic_0001>
module attributes {stable_mosaic.version = 11 : i64} {
  func.func @sigmoid_flow_kernel(%arg0: i32, %arg1: i32, %arg2: memref<1x128x24xf32, #tpu.memory_space<vmem>>, %arg3: memref<1x1x128xf32, #tpu.memory_space<vmem>>, %arg4: memref<1x1x128xf32, #tpu.memory_space<vmem>>, %arg5: memref<1x1x128xf32, #tpu.memory_space<vmem>>) attributes {dimension_semantics = [#tpu.dimension_semantics<parallel>, #tpu.dimension_semantics<parallel>], iteration_bounds = array<i64: 2, 1>, scalar_prefetch = 0 : i64, scratch_operands = 0 : i64, tpu.core_type = #tpu.core_type<tc>, window_params = [{transform_indices = @transform_0, window_bounds = array<i64: 1, 128, 24>}, {transform_indices = @transform_1, window_bounds = array<i64: 1, 1, 128>}, {transform_indices = @transform_2, window_bounds = array<i64: 1, 1, 128>}, {transform_indices = @transform_3, window_bounds = array<i64: 1, 1, 128>}]} {
    %c0 = arith.constant 0 : index
    %c0_0 = arith.constant 0 : index
    %c0_1 = arith.constant 0 : index
    %0 = vector.load %arg2[%c0, %c0_0, %c0_1] : memref<1x128x24xf32, #tpu.memory_space<vmem>>, vector<1x128x24xf32>
    %1 = vector.shape_cast %0 : vector<1x128x24xf32> to vector<128x24xf32>
    %c0_2 = arith.constant 0 : index
    %c0_3 = arith.constant 0 : index
    %c0_4 = arith.constant 0 : index
    %2 = vector.load %arg3[%c0_2, %c0_3, %c0_4] : memref<1x1x128xf32, #tpu.memory_space<vmem>>, vector<1x1x128xf32>
    %3 = vector.shape_cast %2 : vector<1x1x128xf32> to vector<1x128xf32>
    %4 = tpu.iota {dimensions = array<i32: 0>} : vector<24x24xi32>
    %5 = tpu.iota {dimensions = array<i32: 1>} : vector<24x24xi32>
    %6 = arith.cmpi eq, %4, %5 : vector<24x24xi32>
    %7 = arith.extui %6 : vector<24x24xi1> to vector<24x24xi32>
    %8 = arith.sitofp %7 : vector<24x24xi32> to vector<24x24xf32>
    %cst = arith.constant dense<0.000000e+00> : vector<24x128xf32>
    %9 = tpu.matmul %8, %1, %cst {dimension_numbers = #tpu.dot_dimension_numbers<[1], [1], [0], [0], [0, 0, 1, 0], [], []>} : vector<24x24xf32>, vector<128x24xf32>, vector<24x128xf32> -> vector<24x128xf32>
    %10 = vector.extract_strided_slice %9 {offsets = [0, 0], sizes = [8, 128], strides = [1, 1]} : vector<24x128xf32> to vector<8x128xf32>
    %11 = vector.extract_strided_slice %9 {offsets = [8, 0], sizes = [8, 128], strides = [1, 1]} : vector<24x128xf32> to vector<8x128xf32>
    %12 = vector.extract_strided_slice %9 {offsets = [16, 0], sizes = [8, 128], strides = [1, 1]} : vector<24x128xf32> to vector<8x128xf32>
    %cst_5 = arith.constant -1.000000e+02 : f32
    %cst_6 = arith.constant 1.000000e+02 : f32
    %13 = vector.broadcast %cst_5 : f32 to vector<1x128xf32>
    %14 = arith.maximumf %13, %3 : vector<1x128xf32>
    %15 = vector.broadcast %cst_6 : f32 to vector<1x128xf32>
    %16 = arith.minimumf %15, %14 : vector<1x128xf32>
    %cst_7 = arith.constant 0.000000e+00 : f32
    %17 = vector.broadcast %cst_7 : f32 to vector<8x128xf32>
    %18 = arith.maximumf %10, %17 : vector<8x128xf32>
    %19 = vector.broadcast %cst_7 : f32 to vector<8x128xf32>
    %20 = arith.subf %10, %19 : vector<8x128xf32>
    %21 = arith.cmpf one, %20, %20 : vector<8x128xf32>
    %22 = vector.broadcast %cst_7 : f32 to vector<8x128xf32>
    %23 = arith.addf %10, %22 : vector<8x128xf32>
    %24 = math.absf %20 : vector<8x128xf32>
    %cst_8 = arith.constant 0.000000e+00 : f32
    %25 = vector.broadcast %cst_8 : f32 to vector<8x128xf32>
    %26 = arith.subf %25, %24 : vector<8x128xf32>
    %27 = math.exp %26 : vector<8x128xf32>
    %28 = math.log1p %27 : vector<8x128xf32>
    %29 = arith.addf %18, %28 : vector<8x128xf32>
    %30 = arith.select %21, %23, %29 : vector<8x128xi1>, vector<8x128xf32>
    %cst_9 = arith.constant 9.99999997E-7 : f32
    %31 = vector.broadcast %cst_9 : f32 to vector<8x128xf32>
    %32 = arith.addf %30, %31 : vector<8x128xf32>
    %cst_10 = arith.constant dense<0xFF800000> : vector<128xf32>
    %33 = vector.multi_reduction <maximumf>, %12, %cst_10 [0] : vector<8x128xf32> to vector<128xf32>
    %34 = vector.shape_cast %33 : vector<128xf32> to vector<1x128xf32>
    %35 = vector.broadcast %34 : vector<1x128xf32> to vector<8x128xf32>
    %36 = arith.subf %12, %35 : vector<8x128xf32>
    %37 = math.exp %36 : vector<8x128xf32>
    %cst_11 = arith.constant dense<0.000000e+00> : vector<128xf32>
    %38 = vector.multi_reduction <add>, %37, %cst_11 [0] : vector<8x128xf32> to vector<128xf32>
    %39 = vector.shape_cast %38 : vector<128xf32> to vector<1x128xf32>
    %40 = math.log %39 : vector<1x128xf32>
    %41 = tpu.reciprocal %39 : vector<1x128xf32> -> vector<1x128xf32>
    %42 = vector.broadcast %16 : vector<1x128xf32> to vector<8x128xf32>
    %43 = arith.mulf %32, %42 : vector<8x128xf32>
    %44 = arith.addf %43, %11 : vector<8x128xf32>
    %cst_12 = arith.constant 0.000000e+00 : f32
    %45 = vector.broadcast %cst_12 : f32 to vector<8x128xf32>
    %46 = arith.subf %45, %44 : vector<8x128xf32>
    %cst_13 = arith.constant 0.000000e+00 : f32
    %47 = vector.broadcast %cst_13 : f32 to vector<8x128xf32>
    %48 = arith.maximumf %46, %47 : vector<8x128xf32>
    %49 = vector.broadcast %cst_13 : f32 to vector<8x128xf32>
    %50 = arith.subf %46, %49 : vector<8x128xf32>
    %51 = arith.cmpf one, %50, %50 : vector<8x128xf32>
    %52 = vector.broadcast %cst_13 : f32 to vector<8x128xf32>
    %53 = arith.addf %46, %52 : vector<8x128xf32>
    %54 = math.absf %50 : vector<8x128xf32>
    %cst_14 = arith.constant 0.000000e+00 : f32
    %55 = vector.broadcast %cst_14 : f32 to vector<8x128xf32>
    %56 = arith.subf %55, %54 : vector<8x128xf32>
    %57 = math.exp %56 : vector<8x128xf32>
    %58 = math.log1p %57 : vector<8x128xf32>
    %59 = arith.addf %48, %58 : vector<8x128xf32>
    %60 = arith.select %51, %53, %59 : vector<8x128xi1>, vector<8x128xf32>
    %cst_15 = arith.constant 0.000000e+00 : f32
    %61 = vector.broadcast %cst_15 : f32 to vector<8x128xf32>
    %62 = arith.subf %61, %60 : vector<8x128xf32>
    %63 = math.exp %62 : vector<8x128xf32>
    %cst_16 = arith.constant 9.99999997E-7 : f32
    %cst_17 = arith.constant 0.999998986 : f32
    %64 = vector.broadcast %cst_16 : f32 to vector<8x128xf32>
    %65 = arith.maximumf %64, %63 : vector<8x128xf32>
    %66 = vector.broadcast %cst_17 : f32 to vector<8x128xf32>
    %67 = arith.minimumf %66, %65 : vector<8x128xf32>
    %68 = arith.mulf %37, %67 : vector<8x128xf32>
    %cst_18 = arith.constant dense<0.000000e+00> : vector<128xf32>
    %69 = vector.multi_reduction <add>, %68, %cst_18 [0] : vector<8x128xf32> to vector<128xf32>
    %70 = vector.shape_cast %69 : vector<128xf32> to vector<1x128xf32>
    %71 = arith.mulf %70, %41 : vector<1x128xf32>
    %72 = arith.mulf %37, %32 : vector<8x128xf32>
    %cst_19 = arith.constant 2.000000e+00 : f32
    %73 = vector.broadcast %cst_19 : f32 to vector<8x128xf32>
    %74 = arith.mulf %73, %60 : vector<8x128xf32>
    %75 = arith.addf %44, %74 : vector<8x128xf32>
    %cst_20 = arith.constant 0.000000e+00 : f32
    %76 = vector.broadcast %cst_20 : f32 to vector<8x128xf32>
    %77 = arith.subf %76, %75 : vector<8x128xf32>
    %78 = math.exp %77 : vector<8x128xf32>
    %79 = arith.mulf %72, %78 : vector<8x128xf32>
    %cst_21 = arith.constant dense<0.000000e+00> : vector<128xf32>
    %80 = vector.multi_reduction <add>, %79, %cst_21 [0] : vector<8x128xf32> to vector<128xf32>
    %81 = vector.shape_cast %80 : vector<128xf32> to vector<1x128xf32>
    %cst_22 = arith.constant 1.000000e-35 : f32
    %82 = vector.broadcast %cst_22 : f32 to vector<1x128xf32>
    %83 = arith.maximumf %81, %82 : vector<1x128xf32>
    %84 = math.log %83 : vector<1x128xf32>
    %85 = arith.subf %84, %40 : vector<1x128xf32>
    %cst_23 = arith.constant 2.000000e-06 : f32
    %86 = vector.broadcast %cst_23 : f32 to vector<1x128xf32>
    %87 = arith.subf %85, %86 : vector<1x128xf32>
    %cst_24 = arith.constant 0.999998986 : f32
    %88 = vector.broadcast %cst_24 : f32 to vector<1x128xf32>
    %89 = arith.mulf %71, %88 : vector<1x128xf32>
    %cst_25 = arith.constant 5.000000e-07 : f32
    %90 = vector.broadcast %cst_25 : f32 to vector<1x128xf32>
    %91 = arith.addf %89, %90 : vector<1x128xf32>
    %92 = math.log %91 : vector<1x128xf32>
    %cst_26 = arith.constant 0.000000e+00 : f32
    %93 = vector.broadcast %cst_26 : f32 to vector<1x128xf32>
    %94 = arith.subf %93, %91 : vector<1x128xf32>
    %95 = math.log1p %94 : vector<1x128xf32>
    %96 = arith.subf %92, %95 : vector<1x128xf32>
    %cst_27 = arith.constant 2.000000e+00 : f32
    %97 = vector.broadcast %cst_27 : f32 to vector<1x128xf32>
    %98 = arith.mulf %97, %87 : vector<1x128xf32>
    %cst_28 = arith.constant -1.00000045E-6 : f32
    %99 = vector.broadcast %cst_28 : f32 to vector<1x128xf32>
    %100 = arith.addf %98, %99 : vector<1x128xf32>
    %101 = arith.subf %100, %92 : vector<1x128xf32>
    %102 = arith.subf %101, %95 : vector<1x128xf32>
    %103 = arith.cmpf one, %96, %96 : vector<1x128xf32>
    %cst_29 = arith.constant 0.000000e+00 : f32
    %104 = vector.broadcast %cst_29 : f32 to vector<1x128xf32>
    %105 = arith.select %103, %104, %96 : vector<1x128xi1>, vector<1x128xf32>
    %c0_30 = arith.constant 0 : index
    %c0_31 = arith.constant 0 : index
    %c0_32 = arith.constant 0 : index
    %106 = vector.load %arg4[%c0_30, %c0_31, %c0_32] : memref<1x1x128xf32, #tpu.memory_space<vmem>>, vector<1x1x128xf32>
    %107 = vector.shape_cast %106 : vector<1x1x128xf32> to vector<1x128xf32>
    %108 = vector.shape_cast %105 : vector<1x128xf32> to vector<1x1x128xf32>
    tpu.vector_store %arg4[%c0_30, %c0_31, %c0_32], %108 {strides = array<i32>} : memref<1x1x128xf32, #tpu.memory_space<vmem>>, vector<1x1x128xf32>,
    %c0_33 = arith.constant 0 : index
    %c0_34 = arith.constant 0 : index
    %c0_35 = arith.constant 0 : index
    %109 = vector.load %arg5[%c0_33, %c0_34, %c0_35] : memref<1x1x128xf32, #tpu.memory_space<vmem>>, vector<1x1x128xf32>
    %110 = vector.shape_cast %109 : vector<1x1x128xf32> to vector<1x128xf32>
    %111 = vector.shape_cast %102 : vector<1x128xf32> to vector<1x1x128xf32>
    tpu.vector_store %arg5[%c0_33, %c0_34, %c0_35], %111 {strides = array<i32>} : memref<1x1x128xf32, #tpu.memory_space<vmem>>, vector<1x1x128xf32>,
    return
  }
  func.func @transform_0(%arg0: i32, %arg1: i32) -> (i32, i32, i32) {
    %c0_i32 = arith.constant 0 : i32
    %c0_i32_0 = arith.constant 0 : i32
    return %arg0, %arg1, %c0_i32 : i32, i32, i32
  }
  func.func @transform_1(%arg0: i32, %arg1: i32) -> (i32, i32, i32) {
    %c0_i32 = arith.constant 0 : i32
    %c0_i32_0 = arith.constant 0 : i32
    return %arg0, %c0_i32, %arg1 : i32, i32, i32
  }
  func.func @transform_2(%arg0: i32, %arg1: i32) -> (i32, i32, i32) {
    %c0_i32 = arith.constant 0 : i32
    %c0_i32_0 = arith.constant 0 : i32
    return %arg0, %c0_i32, %arg1 : i32, i32, i32
  }
  func.func @transform_3(%arg0: i32, %arg1: i32) -> (i32, i32, i32) {
    %c0_i32 = arith.constant 0 : i32
    %c0_i32_0 = arith.constant 0 : i32
    return %arg0, %c0_i32, %arg1 : i32, i32, i32
  }
}

</mosaic_0001>

<llo_original>
// kernel: sigmoid_flow_forward.1
$region0: #{sigmoid_flow_forward.1}
  #allocation0 [shape = 'u32[]', space=smem, size = 0x4, offset = 0x4, fixed_abs, tag = 'smem constant byte address 0x4 - core index']
  #allocation1 [shape = 'u32[144,128]{1,0:T(1,128)}', space=vmem, size = 0x12000, scoped, tag = 'internal scratch']
  %s0 = inlined_call_operand.vmem [shape: f32[2,128,24], index: 0, kind: input, shape index: {}]
  %s1 = inlined_call_operand.vmem [shape: f32[2,1,128], index: 1, kind: input, shape index: {}]
  %s2 = inlined_call_operand.hbm [shape: f32[2,1,128], index: 2, kind: output, shape index: {0}]
  %s3 = inlined_call_operand.vmem [shape: f32[2,1,128], index: 3, kind: output, shape index: {1}]
  %4 = xla_tuple %s2, %s3
  %s5 = sld [smem:[#allocation0]]
  $region49: #{sigmoid_flow_forward.1} parent=0
    _
  %s7 = ssub.s32 1, %s5
  %s8 = scalar_select 0, %s7, %s5
  $region1: #{sigmoid_flow_forward.1} parent=0
    #allocation2 [shape = 'u8[1024]{0}', space=vmem, size = 0x400, scoped, tag = 'output window, operand 0']
    #allocation3 [shape = 's32[2]{0}', space=sflag, size = 0x8, scoped, tag = 'scoped memory for sigmoid_flow_forward.1']
    %9 = vsyncpa [#allocation3], 0
    %s10 = scalar_lea.sflag [#allocation3], 1
    %11 = vsyncpa %s10, 0
    loop: start=0, step=1, limit=4
    $region2: #{sigmoid_flow_forward.1} parent=1 // loop_pre_header
      _
    $region3: #{sigmoid_flow_forward.1} parent=1 // loop_header
      %s13 = sphi 0, %s17
      %p14 = scmp.ge.s32.totalorder %s13, 4
      %s20 = sphi 0, %s32
      %s21 = sphi 0, %s28
      %s22 = sphi 0, %s20
      %s23 = sphi 0, %s21
      %s24 = sphi 0, %s22
      %s25 = sphi 0, %s23
      %s37 = sphi 0, %s39
      %s40 = sphi 0, %s37
      %s41 = sphi 0, %s40
      %s57 = sphi 0, %s41
      %s65 = sphi 0, %s67
      %s68 = sphi 0, %s65
      %s69 = sphi 0, %s68
      %s85 = sphi 0, %s69
      %s93 = sphi 0, %s95
      %s96 = sphi 0, %s93
      %s97 = sphi 0, %s96
      %s113 = sphi 0, %s97
      %s121 = sphi 0, %s123
      %s124 = sphi 0, %s121
      %s125 = sphi 0, %s124
      %s141 = sphi 0, %s125
    $region4: #{sigmoid_flow_forward.1} parent=1 // loop_header_branch
      %16 = sbr.rel (%p14) target = $region8
    $region5: #{sigmoid_flow_forward.1} parent=1 // loop_body
      %s18 = ssub.s32 %s13, 1
      %s19 = ssub.s32 %s13, 2
      %s26 = sadd.s32 1, %s21
      %p27 = scmp.ge.s32.totalorder %s26, 1
      %s28 = scalar_select %p27, 0, %s26
      %s29 = sadd.s32 1, %s20
      %s30 = scalar_select %p27, %s29, %s20
      %p31 = scmp.ge.s32.totalorder %s30, 2
      %s32 = scalar_select %p31, 0, %s30
      %s33 = ssub.s32 %s20, %s32
      %s34 = ssub.s32 %s21, %s28
      %s35 = sor.u32 %s33, %s34
      %p36 = scmp.eq.s32.totalorder %s35, 0
      %s38 = sadd.s32 %s37, 1
      %s39 = scalar_select %p36, %s37, %s38
      %p42 = pneg %p36
      %p43 = scmp.eq.s32.totalorder %s13, 1
      %p44 = por %p42, %p43
      %p45 = scmp.ne.s32.totalorder %s37, %s40
      %p46 = scmp.eq.s32.totalorder %s13, 0
      %p47 = por %p45, %p46
      %p48 = scmp.ne.s32.totalorder %s37, %s40
      %p49 = scmp.eq.s32.totalorder %s18, 1
      %p50 = por %p48, %p49
      %p51 = scmp.ne.s32.totalorder %s40, %s41
      %p52 = scmp.eq.s32.totalorder %s18, 0
      %p53 = por %p51, %p52
      %p54 = scmp.ne.s32.totalorder %s40, %s41
      %p55 = scmp.eq.s32.totalorder %s19, 1
      %p56 = por %p54, %p55
      %p58 = scmp.ne.s32.totalorder %s41, %s57
      %p59 = scmp.eq.s32.totalorder %s19, 0
      %p60 = por %p58, %p59
      %s61 = ssub.s32 %s20, %s32
      %s62 = ssub.s32 %s21, %s28
      %s63 = sor.u32 %s61, %s62
      %p64 = scmp.eq.s32.totalorder %s63, 0
      %s66 = sadd.s32 %s65, 1
      %s67 = scalar_select %p64, %s65, %s66
      %p70 = pneg %p64
      %p71 = scmp.eq.s32.totalorder %s13, 1
      %p72 = por %p70, %p71
      %p73 = scmp.ne.s32.totalorder %s65, %s68
      %p74 = scmp.eq.s32.totalorder %s13, 0
      %p75 = por %p73, %p74
      %p76 = scmp.ne.s32.totalorder %s65, %s68
      %p77 = scmp.eq.s32.totalorder %s18, 1
      %p78 = por %p76, %p77
      %p79 = scmp.ne.s32.totalorder %s68, %s69
      %p80 = scmp.eq.s32.totalorder %s18, 0
      %p81 = por %p79, %p80
      %p82 = scmp.ne.s32.totalorder %s68, %s69
      %p83 = scmp.eq.s32.totalorder %s19, 1
      %p84 = por %p82, %p83
      %p86 = scmp.ne.s32.totalorder %s69, %s85
      %p87 = scmp.eq.s32.totalorder %s19, 0
      %p88 = por %p86, %p87
      %s89 = ssub.s32 %s20, %s32
      %s90 = ssub.s32 %s21, %s28
      %s91 = sor.u32 %s89, %s90
      %p92 = scmp.eq.s32.totalorder %s91, 0
      %s94 = sadd.s32 %s93, 1
      %s95 = scalar_select %p92, %s93, %s94
      %p98 = pneg %p92
      %p99 = scmp.eq.s32.totalorder %s13, 1
      %p100 = por %p98, %p99
      %p101 = scmp.ne.s32.totalorder %s93, %s96
      %p102 = scmp.eq.s32.totalorder %s13, 0
      %p103 = por %p101, %p102
      %p104 = scmp.ne.s32.totalorder %s93, %s96
      %p105 = scmp.eq.s32.totalorder %s18, 1
      %p106 = por %p104, %p105
      %p107 = scmp.ne.s32.totalorder %s96, %s97
      %p108 = scmp.eq.s32.totalorder %s18, 0
      %p109 = por %p107, %p108
      %p110 = scmp.ne.s32.totalorder %s96, %s97
      %p111 = scmp.eq.s32.totalorder %s19, 1
      %p112 = por %p110, %p111
      %p114 = scmp.ne.s32.totalorder %s97, %s113
      %p115 = scmp.eq.s32.totalorder %s19, 0
      %p116 = por %p114, %p115
      %s117 = ssub.s32 %s20, %s32
      %s118 = ssub.s32 %s21, %s28
      %s119 = sor.u32 %s117, %s118
      %p120 = scmp.eq.s32.totalorder %s119, 0
      %s122 = sadd.s32 %s121, 1
      %s123 = scalar_select %p120, %s121, %s122
      %p126 = pneg %p120
      %p127 = scmp.eq.s32.totalorder %s13, 1
      %p128 = por %p126, %p127
      %p129 = scmp.ne.s32.totalorder %s121, %s124
      %p130 = scmp.eq.s32.totalorder %s13, 0
      %p131 = por %p129, %p130
      %p132 = scmp.ne.s32.totalorder %s121, %s124
      %p133 = scmp.eq.s32.totalorder %s18, 1
      %p134 = por %p132, %p133
      %p135 = scmp.ne.s32.totalorder %s124, %s125
      %p136 = scmp.eq.s32.totalorder %s18, 0
      %p137 = por %p135, %p136
      %p138 = scmp.ne.s32.totalorder %s124, %s125
      %p139 = scmp.eq.s32.totalorder %s19, 1
      %p140 = por %p138, %p139
      %p142 = scmp.ne.s32.totalorder %s125, %s141
      %p143 = scmp.eq.s32.totalorder %s19, 0
      %p144 = por %p142, %p143
      %p145 = scmp.le.s32.totalorder 1, %s13
      %p146 = scmp.lt.s32.totalorder %s13, 3
      %p147 = pnand %p145, %p146
      %p148 = pneg %p147
      // Predicated region
      $region9: #{sigmoid_flow_forward.1} parent=5 // pred_check
        _
      $region10: #{sigmoid_flow_forward.1} parent=5 // pred_check_branch
        %150 = sbr.rel (%p147) target = $region12
      $region11: #{sigmoid_flow_forward.1} parent=5 // pred_region
        %s151 = ssub.s32 %s13, 1
      $region12: #{sigmoid_flow_forward.1} parent=5 // pred_fallthru
        _
      %p152 = scmp.lt.s32.totalorder %s13, 2
      // Predicated region
      $region13: #{sigmoid_flow_forward.1} parent=5 // pred_check
        %p153 = pneg %p152
      $region14: #{sigmoid_flow_forward.1} parent=5 // pred_check_branch
        %155 = sbr.rel (%p153) target = $region16
      $region15: #{sigmoid_flow_forward.1} parent=5 // pred_region
        // Predicated region
        $region17: #{sigmoid_flow_forward.1} parent=15 // pred_check
          %p156 = pneg %p47
        $region18: #{sigmoid_flow_forward.1} parent=15 // pred_check_branch
          %158 = sbr.rel (%p156) target = $region20
        $region19: #{sigmoid_flow_forward.1} parent=15 // pred_region
          %s159 = smul.u32 16, %s21
          %p160 = scmp.lt.s32.totalorder %s20, 1
          %s161 = scalar_select %p160, %s20, 1
          %p162 = scmp.lt.s32.totalorder %s159, 15
          %s163 = scalar_select %p162, %s159, 15
          %s164 = smul.addr %s161, 16
          %s165 = sadd.s32 %s163, %s164
          %s166 = smul.addr %s165, 8
          %s167 = scalar_lea.vmem %s0, %s166
          %s168 = smul.u32 16, %s21
        $region20: #{sigmoid_flow_forward.1} parent=15 // pred_fallthru
          _
        // Predicated region
        $region21: #{sigmoid_flow_forward.1} parent=15 // pred_check
          %p169 = pneg %p75
        $region22: #{sigmoid_flow_forward.1} parent=15 // pred_check_branch
          %171 = sbr.rel (%p169) target = $region24
        $region23: #{sigmoid_flow_forward.1} parent=15 // pred_region
          %p172 = scmp.lt.s32.totalorder %s20, 1
          %s173 = scalar_select %p172, %s20, 1
          %p174 = scmp.lt.s32.totalorder %s21, 0
          %s175 = scalar_select %p174, %s21, 0
          %s176 = sadd.s32 %s175, %s173
          %s177 = scalar_lea.vmem %s1, %s176
        $region24: #{sigmoid_flow_forward.1} parent=15 // pred_fallthru
          _
      $region16: #{sigmoid_flow_forward.1} parent=5 // pred_fallthru
        _
      %p178 = scmp.le.s32.totalorder 1, %s13
      %p179 = scmp.lt.s32.totalorder %s13, 3
      %p180 = pnand %p178, %p179
      %p181 = pneg %p180
      // Predicated region
      $region25: #{sigmoid_flow_forward.1} parent=5 // pred_check
        _
      $region26: #{sigmoid_flow_forward.1} parent=5 // pred_check_branch
        %183 = sbr.rel (%p180) target = $region28
      $region27: #{sigmoid_flow_forward.1} parent=5 // pred_region
        %s184 = ssub.s32 %s13, 1
        %s185 = smul.u32 16, %s23
        %p186 = scmp.lt.s32.totalorder %s22, 1
        %s187 = scalar_select %p186, %s22, 1
        %p188 = scmp.lt.s32.totalorder %s185, 15
        %s189 = scalar_select %p188, %s185, 15
        %s190 = smul.addr %s187, 16
        %s191 = sadd.s32 %s189, %s190
        %s192 = smul.addr %s191, 8
        %s193 = scalar_lea.vmem %s0, %s192
        %p194 = pneg %p53
        %p195 = pneg %p50
        %p196 = scmp.lt.s32.totalorder %s22, 1
        %s197 = scalar_select %p196, %s22, 1
        %p198 = scmp.lt.s32.totalorder %s23, 0
        %s199 = scalar_select %p198, %s23, 0
        %s200 = sadd.s32 %s199, %s197
        %s201 = scalar_lea.vmem %s1, %s200
        %p202 = pneg %p81
        %p203 = pneg %p78
        %p204 = pneg %p109
        %p205 = pneg %p106
        %s206 = sand.u32 %s96, 1
        %s207 = scalar_lea.sflag [#allocation3], %s206
        %s208 = sand.u32 %s96, 1
        %s209 = scalar_lea.vmem [#allocation2], %s208
        %p210 = pneg %p137
        %p211 = pneg %p134
        %p212 = scmp.lt.s32.totalorder %s22, 1
        %s213 = scalar_select %p212, %s22, 1
        %p214 = scmp.lt.s32.totalorder %s23, 0
        %s215 = scalar_select %p214, %s23, 0
        %s216 = sadd.s32 %s215, %s213
        %s217 = scalar_lea.vmem %s3, %s216
        %s218 = smul.u32 16, %s23
        %p219 = scmp.lt.s32.totalorder %s22, 1
        %s220 = scalar_select %p219, %s22, 1
        %p221 = scmp.lt.s32.totalorder %s218, 15
        %s222 = scalar_select %p221, %s218, 15
        %s223 = smul.addr %s220, 16
        %s224 = sadd.s32 %s222, %s223
        %s225 = smul.addr %s224, 8
        %s226 = scalar_lea.vmem %s0, %s225
        %s227 = smul.u32 16, %s23
        %p228 = scmp.lt.s32.totalorder %s22, 1
        %s229 = scalar_select %p228, %s22, 1
        %p230 = scmp.lt.s32.totalorder %s23, 0
        %s231 = scalar_select %p230, %s23, 0
        %s232 = sadd.s32 %s231, %s229
        %s233 = scalar_lea.vmem %s1, %s232
        %p234 = scmp.lt.s32.totalorder %s22, 1
        %s235 = scalar_select %p234, %s22, 1
        %p236 = scmp.lt.s32.totalorder %s23, 0
        %s237 = scalar_select %p236, %s23, 0
        %s238 = sadd.s32 %s237, %s235
        %s239 = scalar_lea.vmem %s3, %s238
        %v240 = vld [vmem:[%s226] sm:$0xff]
        %v241 = vld [vmem:[%s226 + $0x8] sm:$0xff]
        %v242 = vld [vmem:[%s226 + $0x10] sm:$0xff]
        %v243 = vld [vmem:[%s226 + $0x18] sm:$0xff]
        %v244 = vld [vmem:[%s226 + $0x20] sm:$0xff]
        %v245 = vld [vmem:[%s226 + $0x28] sm:$0xff]
        %v246 = vld [vmem:[%s226 + $0x30] sm:$0xff]
        %v247 = vld [vmem:[%s226 + $0x38] sm:$0xff]
        %v248 = vld [vmem:[%s226 + $0x40] sm:$0xff]
        %v249 = vld [vmem:[%s226 + $0x48] sm:$0xff]
        %v250 = vld [vmem:[%s226 + $0x50] sm:$0xff]
        %v251 = vld [vmem:[%s226 + $0x58] sm:$0xff]
        %v252 = vld [vmem:[%s226 + $0x60] sm:$0xff]
        %v253 = vld [vmem:[%s226 + $0x68] sm:$0xff]
        %v254 = vld [vmem:[%s226 + $0x70] sm:$0xff]
        %v255 = vld [vmem:[%s226 + $0x78] sm:$0xff]
        %v256 = vld [vmem:[%s233] sm:$0x1]
        %v257 = vlaneseq
        %v258 = vshrl.u32 %v257, 7
        %v259 = vadd.s32 %v258, 8
        %v260 = vadd.s32 %v258, 16
        %v261 = vlaneseq
        %v262 = vand.u32 %v261, 127
        %vm263 = vcmp.eq.s32.totalorder %v258, %v262
        %vm264 = vcmp.eq.s32.totalorder %v259, %v262
        %vm265 = vcmp.eq.s32.totalorder %v260, %v262
        %v266 = vsel %vm263, 1, 0
        %v267 = vsel %vm264, 1, 0
        %v268 = vsel %vm265, 1, 0
        %v269 = vcvt.s32.f32 %v266
        %v270 = vcvt.s32.f32 %v267
        %v271 = vcvt.s32.f32 %v268
        %vm272 = vcmask 195584
        %v274 = vsel %vm272, %v269, 0
        %v277 = vsel %vm272, %v270, 0
        %v280 = vsel %vm272, %v271, 0
        %v283 = vsel %vm272, %v240, 0
        %v286 = vsel %vm272, %v241, 0
        %v289 = vsel %vm272, %v242, 0
        %v292 = vsel %vm272, %v243, 0
        %v295 = vsel %vm272, %v244, 0
        %v298 = vsel %vm272, %v245, 0
        %v301 = vsel %vm272, %v246, 0
        %v304 = vsel %vm272, %v247, 0
        %v307 = vsel %vm272, %v248, 0
        %v310 = vsel %vm272, %v249, 0
        %v313 = vsel %vm272, %v250, 0
        %v316 = vsel %vm272, %v251, 0
        %v319 = vsel %vm272, %v252, 0
        %v322 = vsel %vm272, %v253, 0
        %v325 = vsel %vm272, %v254, 0
        %v328 = vsel %vm272, %v255, 0
        %330 = vmatprep.subr.mxu0 0.0
        %331 = vmatpush1.xpose.msra.mxu0 %v328
        %332 = vmatprep.subr.mxu0 0.0
        %333 = vmatpush1.xpose.msra.mxu0 %v325
        %334 = vmatprep.subr.mxu0 0.0
        %335 = vmatpush1.xpose.msra.mxu0 %v322
        %336 = vmatprep.subr.mxu0 0.0
        %337 = vmatpush1.xpose.msra.mxu0 %v319
        %338 = vmatprep.subr.mxu0 0.0
        %339 = vmatpush1.xpose.msra.mxu0 %v316
        %340 = vmatprep.subr.mxu0 0.0
        %341 = vmatpush1.xpose.msra.mxu0 %v313
        %342 = vmatprep.subr.mxu0 0.0
        %343 = vmatpush1.xpose.msra.mxu0 %v310
        %344 = vmatprep.subr.mxu0 0.0
        %345 = vmatpush1.xpose.msra.mxu0 %v307
        %346 = vmatprep.subr.mxu0 0.0
        %347 = vmatpush1.xpose.msra.mxu0 %v304
        %348 = vmatprep.subr.mxu0 0.0
        %349 = vmatpush1.xpose.msra.mxu0 %v301
        %350 = vmatprep.subr.mxu0 0.0
        %351 = vmatpush1.xpose.msra.mxu0 %v298
        %352 = vmatprep.subr.mxu0 0.0
        %353 = vmatpush1.xpose.msra.mxu0 %v295
        %354 = vmatprep.subr.mxu0 0.0
        %355 = vmatpush1.xpose.msra.mxu0 %v292
        %356 = vmatprep.subr.mxu0 0.0
        %357 = vmatpush1.xpose.msra.mxu0 %v289
        %358 = vmatprep.subr.mxu0 0.0
        %359 = vmatpush1.xpose.msra.mxu0 %v286
        %360 = vmatprep.subr.mxu0 0.0
        %361 = vmatpush1.xpose.msra.mxu0 %v283
        %362 = vmatprep.subr.mxu0 0.0
        %363 = vmatpush2.xpose.msra.mxu0 0.0
        %364 = vmatprep.subr.mxu0 0.0
        %365 = vmatpush2.xpose.msra.mxu0 0.0
        %366 = vmatprep.subr.mxu0 0.0
        %367 = vmatpush2.xpose.msra.mxu0 0.0
        %368 = vmatprep.subr.mxu0 0.0
        %369 = vmatpush2.xpose.msra.mxu0 0.0
        %370 = vmatprep.subr.mxu0 0.0
        %371 = vmatpush2.xpose.msra.mxu0 0.0
        %372 = vmatprep.subr.mxu0 0.0
        %373 = vmatpush2.xpose.msra.mxu0 0.0
        %374 = vmatprep.subr.mxu0 0.0
        %375 = vmatpush2.xpose.msra.mxu0 0.0
        %376 = vmatprep.subr.mxu0 0.0
        %377 = vmatpush2.xpose.msra.mxu0 0.0
        %378 = vmatprep.subr.mxu0 0.0
        %379 = vmatpush2.xpose.msra.mxu0 0.0
        %380 = vmatprep.subr.mxu0 0.0
        %381 = vmatpush2.xpose.msra.mxu0 0.0
        %382 = vmatprep.subr.mxu0 0.0
        %383 = vmatpush2.xpose.msra.mxu0 0.0
        %384 = vmatprep.subr.mxu0 0.0
        %385 = vmatpush2.xpose.msra.mxu0 0.0
        %386 = vmatprep.subr.mxu0 0.0
        %387 = vmatpush2.xpose.msra.mxu0 0.0
        %388 = vmatprep.subr.mxu0 0.0
        %389 = vmatpush2.xpose.msra.mxu0 0.0
        %390 = vmatprep.subr.mxu0 0.0
        %391 = vmatpush2.xpose.msra.mxu0 0.0
        %392 = vmatprep.subr.mxu0 0.0
        %393 = vmatpush2.xpose.msra.mxu0 0.0
        %394 = vmatprep.mubr.f32.mxu0 0.0
        %395 = vmatmul.mubr.f32.gmra.mxu0 %v274
        %v396 = vpop.f32.mrf.mxu0
        %v397 = vadd.f32 0.0, %v396
        %v398 = vpop.f32.mrf.mxu0
        %399 = vmatprep.mubr.f32.mxu0 0.0
        %400 = vmatmul.mubr.f32.gmra.mxu0 %v277
        %v401 = vpop.f32.mrf.mxu0
        %v402 = vadd.f32 0.0, %v401
        %v403 = vpop.f32.mrf.mxu0
        %404 = vmatprep.mubr.f32.mxu0 0.0
        %405 = vmatmul.mubr.f32.gmra.mxu0 %v280
        %v406 = vpop.f32.mrf.mxu0
        %v407 = vadd.f32 0.0, %v406
        %v408 = vpop.f32.mrf.mxu0
        %409 = vdwg.mxu0
        %v410 = vmax.f32 %v256, -100.0
        %v411 = vmin.f32 %v410, 100.0
        %v412 = vmax.f32 %v397, 0.0
        %vm413 = vcmp.ne.f32.partialorder %v397, %v397
        %v414 = vadd.f32 %v397, 0.0
        %v415 = vand.u32 2147483647, %v397
        %v416 = vsub.f32 0.0, %v415
        %v417 = vmul.f32 %v416, 1.442695
        %v418 = vpow.pop %v417
        %v419 = vadd.f32 %v418, 1.0
        %v420 = vlog2.pop %v419
        %v421 = vmul.f32 %v420, 0.6931472
        %v422 = vmul.f32 -0.5, %v418
        %v423 = vadd.f32 %v422, 1.0
        %v424 = vmul.f32 %v423, %v418
        %v425 = vand.u32 2147483647, %v418
        %vm426 = vcmp.lt.f32.partialorder %v425, 0.0004427343
        %v427 = vsel %vm426, %v424, %v421
        %v428 = vadd.f32 %v412, %v427
        %v429 = vsel %vm413, %v414, %v428
        %v430 = vadd.f32 %v429, 1e-06
        %v431 = vrot.slane %v407, 4
        %v432 = vmax.f32 %v407, %v431
        %v433 = vrot.slane %v432, 2
        %v434 = vmax.f32 %v432, %v433
        %v435 = vrot.slane %v434, 1
        %v436 = vmax.f32 %v434, %v435
        %v437 = vsub.f32 %v407, %v436
        %v438 = vmul.f32 %v437, 1.442695
        %v439 = vpow.pop %v438
        %v440 = vrot.slane %v439, 4
        %v441 = vadd.f32 %v439, %v440
        %v442 = vrot.slane %v441, 2
        %v443 = vadd.f32 %v441, %v442
        %v444 = vrot.slane %v443, 1
        %v445 = vadd.f32 %v443, %v444
        %v446 = vlog2.pop %v445
        %v447 = vmul.f32 %v446, 0.6931472
        %v448 = vrcp.pop %v445
        %v450 = vlaneseq
        %v451 = vshrl.u32 %v450, 7
        %v452 = vsub.s32 0, %v451
        %v453 = vrot.slane %v411, %v452
        %v455 = vmul.f32 %v430, %v453
        %v456 = vadd.f32 %v455, %v402
        %v457 = vsub.f32 0.0, %v456
        %v458 = vmax.f32 %v457, 0.0
        %vm459 = vcmp.ne.f32.partialorder %v457, %v457
        %v460 = vadd.f32 %v457, 0.0
        %v461 = vand.u32 2147483647, %v457
        %v462 = vsub.f32 0.0, %v461
        %v463 = vmul.f32 %v462, 1.442695
        %v464 = vpow.pop %v463
        %v465 = vadd.f32 %v464, 1.0
        %v466 = vlog2.pop %v465
        %v467 = vmul.f32 %v466, 0.6931472
        %v468 = vmul.f32 -0.5, %v464
        %v469 = vadd.f32 %v468, 1.0
        %v470 = vmul.f32 %v469, %v464
        %v471 = vand.u32 2147483647, %v464
        %vm472 = vcmp.lt.f32.partialorder %v471, 0.0004427343
        %v473 = vsel %vm472, %v470, %v467
        %v474 = vadd.f32 %v458, %v473
        %v475 = vsel %vm459, %v460, %v474
        %v476 = vsub.f32 0.0, %v475
        %v477 = vmul.f32 %v476, 1.442695
        %v478 = vpow.pop %v477
        %v479 = vmax.f32 %v478, 1e-06
        %v480 = vmin.f32 %v479, 0.999999
        %v481 = vmul.f32 %v439, %v480
        %v482 = vrot.slane %v481, 4
        %v483 = vadd.f32 %v481, %v482
        %v484 = vrot.slane %v483, 2
        %v485 = vadd.f32 %v483, %v484
        %v486 = vrot.slane %v485, 1
        %v487 = vadd.f32 %v485, %v486
        %v488 = vmul.f32 %v487, %v448
        %v489 = vmul.f32 %v439, %v430
        %v490 = vmul.f32 %v475, 2.0
        %v491 = vadd.f32 %v456, %v490
        %v492 = vsub.f32 0.0, %v491
        %v493 = vmul.f32 %v492, 1.442695
        %v494 = vpow.pop %v493
        %v495 = vmul.f32 %v489, %v494
        %v496 = vrot.slane %v495, 4
        %v497 = vadd.f32 %v495, %v496
        %v498 = vrot.slane %v497, 2
        %v499 = vadd.f32 %v497, %v498
        %v500 = vrot.slane %v499, 1
        %v501 = vadd.f32 %v499, %v500
        %v502 = vmax.f32 %v501, 1e-35
        %v503 = vlog2.pop %v502
        %v504 = vmul.f32 %v503, 0.6931472
        %v505 = vsub.f32 %v504, %v447
        %v506 = vsub.f32 %v505, 2e-06
        %v507 = vmul.f32 %v488, 0.999999
        %v508 = vadd.f32 %v507, 5e-07
        %v509 = vlog2.pop %v508
        %v510 = vmul.f32 %v509, 0.6931472
        %v511 = vsub.f32 0.0, %v508
        %v512 = vadd.f32 %v511, 1.0
        %v513 = vlog2.pop %v512
        %v514 = vmul.f32 %v513, 0.6931472
        %v515 = vmul.f32 -0.5, %v511
        %v516 = vadd.f32 %v515, 1.0
        %v517 = vmul.f32 %v516, %v511
        %v518 = vand.u32 2147483647, %v511
        %vm519 = vcmp.lt.f32.partialorder %v518, 0.0004427343
        %v520 = vsel %vm519, %v517, %v514
        %v521 = vsub.f32 %v510, %v520
        %v522 = vmul.f32 %v506, 2.0
        %v523 = vadd.f32 %v522, -1.0000005e-06
        %v524 = vsub.f32 %v523, %v510
        %v525 = vsub.f32 %v524, %v520
        %vm526 = vcmp.ne.f32.partialorder %v521, %v521
        %v527 = vsel %vm526, 0.0, %v521
        %528 = vst [vmem:[%s209] sm:$0x1] %v527
        %529 = vst [vmem:[%s239] sm:$0x1] %v525
        %s530 = sand.u32 %s96, 1
        %s531 = scalar_lea.sflag [#allocation3], %s530
        %s532 = sand.u32 %s96, 1
        %s533 = scalar_lea.vmem [#allocation2], %s532
        %p534 = scmp.lt.s32.totalorder %s22, 1
        %s535 = scalar_select %p534, %s22, 1
        %p536 = scmp.lt.s32.totalorder %s23, 0
        %s537 = scalar_select %p536, %s23, 0
        %s538 = sadd.s32 %s537, %s535
        %s539 = scalar_lea.vmem %s3, %s538
        // Predicated region
        $region29: #{sigmoid_flow_forward.1} parent=27 // pred_check
          %p540 = pneg %p106
        $region30: #{sigmoid_flow_forward.1} parent=27 // pred_check_branch
          %542 = sbr.rel (%p540) target = $region32
        $region31: #{sigmoid_flow_forward.1} parent=27 // pred_region
          %s544 = ssub.s32 16, 16
          %545 = vsyncadd %s531, %s544
          %s546 = sadd.s32 %s23, %s22
          %s547 = smul.addr %s546, 16
          %s548 = scalar_lea.hbm %s2, %s547
          %s550 = sshll.u32 %s533, 4
          %s551 = int_to_ptr.vmem [resolvable:$true] %s550
          %553 = dma.vmem_to_hbm [thread:$0]  %s551, 16, %s548, %s531
        $region32: #{sigmoid_flow_forward.1} parent=27 // pred_fallthru
          _
        // Predicated region
        $region33: #{sigmoid_flow_forward.1} parent=27 // pred_check
          %p554 = pneg %p134
        $region34: #{sigmoid_flow_forward.1} parent=27 // pred_check_branch
          %556 = sbr.rel (%p554) target = $region36
        $region35: #{sigmoid_flow_forward.1} parent=27 // pred_region
          _
        $region36: #{sigmoid_flow_forward.1} parent=27 // pred_fallthru
          _
      $region28: #{sigmoid_flow_forward.1} parent=5 // pred_fallthru
        _
      %p557 = scmp.le.s32.totalorder 2, %s13
      // Predicated region
      $region37: #{sigmoid_flow_forward.1} parent=5 // pred_check
        %p558 = pneg %p557
      $region38: #{sigmoid_flow_forward.1} parent=5 // pred_check_branch
        %560 = sbr.rel (%p558) target = $region40
      $region39: #{sigmoid_flow_forward.1} parent=5 // pred_region
        %s561 = ssub.s32 %s13, 2
        // Predicated region
        $region41: #{sigmoid_flow_forward.1} parent=39 // pred_check
          %p562 = pneg %p112
        $region42: #{sigmoid_flow_forward.1} parent=39 // pred_check_branch
          %564 = sbr.rel (%p562) target = $region44
        $region43: #{sigmoid_flow_forward.1} parent=39 // pred_region
          %s565 = sand.u32 %s97, 1
          %s566 = scalar_lea.sflag [#allocation3], %s565
          %s567 = sand.u32 %s97, 1
          %s568 = scalar_lea.vmem [#allocation2], %s567
          %569 = dma.done %s566, 16
        $region44: #{sigmoid_flow_forward.1} parent=39 // pred_fallthru
          _
        // Predicated region
        $region45: #{sigmoid_flow_forward.1} parent=39 // pred_check
          %p570 = pneg %p140
        $region46: #{sigmoid_flow_forward.1} parent=39 // pred_check_branch
          %572 = sbr.rel (%p570) target = $region48
        $region47: #{sigmoid_flow_forward.1} parent=39 // pred_region
          %p573 = scmp.lt.s32.totalorder %s24, 1
          %s574 = scalar_select %p573, %s24, 1
          %p575 = scmp.lt.s32.totalorder %s25, 0
          %s576 = scalar_select %p575, %s25, 0
          %s577 = sadd.s32 %s576, %s574
          %s578 = scalar_lea.vmem %s3, %s577
        $region48: #{sigmoid_flow_forward.1} parent=39 // pred_fallthru
          _
      $region40: #{sigmoid_flow_forward.1} parent=5 // pred_fallthru
        _
    $region6: #{sigmoid_flow_forward.1} parent=1 // loop_footer
      %s17 = sadd.s32 1, %s13
    $region7: #{sigmoid_flow_forward.1} parent=1 // loop_footer_branch
      %12 = sbr.rel target = $region3
    $region8: #{sigmoid_flow_forward.1} parent=1 // loop_exit
      _
    %579 = vsyncpa [#allocation3], 1
    %s580 = scalar_lea.sflag [#allocation3], 1
    %581 = vsyncpa %s580, 1

</llo_original>
